<compile_context>
chip_gen: v5e
topology: v5e:2x2
jax: 0.10.0
libtpu: 0.0.40
codegen_flags: <defaults>
</compile_context>

<pallas_src>
import functools

import numpy as np
import jax
import jax.numpy as jnp
from jax.experimental import pallas as pl
from jax.experimental.pallas import tpu as pltpu


# ----------------------------------------------------------------------------
# Kernel (feature-major: every tensor is (features, batch_tile))
# ----------------------------------------------------------------------------
def _latent_lya_kernel(z_ref, p_ref, out_ref, *, layout, mu, eps, dt, h, d):
    def pget(name):
        off, r, c = layout[name]            # static python ints -> zero-cost view
        return p_ref[off:off + r, 0:c]

    def mm(w, a):
        # MXU matmul; operands cast to the packed-param dtype (f32 or bf16),
        # accumulation always f32.
        return jnp.dot(w, a.astype(w.dtype), preferred_element_type=jnp.float32)

    d2 = d * d
    x = z_ref[...]                                       # (d, bb) f32

    # ---- fused first layer: [W1; A1] @ x + [b1; c1] -> tanh ----------------
    th = jnp.tanh(mm(pget("w1a1"), x) + pget("bc1"))     # (h + 64, bb)
    t = th[0:h, :]                                       # tanh(W1 x + b1)
    h1 = th[h:h + 64, :]                                 # tanh(A1 x + c1)

    # ---- surrogate Hamiltonian gradient ------------------------------------
    g = mu * x + mm(pget("w2"), t)                       # (d, bb)
    s = 1.0 - t * t                                      # (h, bb)
    w2g = mm(pget("w2t"), g)                             # (h, bb)
    gH = mu * g + mm(pget("w1t"), s * w2g)               # (d, bb)

    # ---- JR_net tail (fused J|R head) ---------------------------------------
    h2 = jnp.tanh(mm(pget("a2"), h1) + pget("c2"))       # (64, bb)
    jr = mm(pget("a3"), h2) + pget("c3")                 # (2*d^2, bb)
    jrJ = jr[0:d2, :]
    jrR = jr[d2:2 * d2, :]

    # ---- (J - R) gH via selection-matrix (segmented-sum) matmuls -----------
    # src = [srow; scol]: srow[m,i]=1 iff m//d==i, scol[m,j]=1 iff m%d==j
    ghrc = mm(pget("src"), gH)                           # (2*d^2, bb)
    gh_rep = ghrc[0:d2, :]                               # gH[m//d, b]
    gh_til = ghrc[d2:2 * d2, :]                          # gH[m% d, b]

    jg = mm(pget("srowT"), jrJ * gh_til)                 # Jf gH
    jtg = mm(pget("scolT"), jrJ * gh_rep)                # Jf^T gH
    v = mm(pget("scolT"), jrR * gh_rep)                  # Rf^T gH
    vt = mm(pget("scol"), v)                             # v[m%d, b]
    rv = mm(pget("srowT"), jrR * vt)                     # Rf Rf^T gH

    dz = jg - jtg - rv - eps * gH
    out_ref[...] = x + dt * dz                           # single lane-dense store


# ----------------------------------------------------------------------------
# Parameter packing: one lane-padded (R, 128) buffer + static layout table
# ----------------------------------------------------------------------------
def pack_params(params, latent_dim, dtype=jnp.float32):
    d = latent_dim
    d2 = d * d
    f = lambda a: np.asarray(a, dtype=np.float32)
    w1, b1, w2 = f(params["w1"]), f(params["b1"]), f(params["w2"])
    a1, c1 = f(params["a1"]), f(params["c1"])
    a2, c2 = f(params["a2"]), f(params["c2"])
    a3, c3 = f(params["a3"]), f(params["c3"])
    h = w1.shape[0]

    m = np.arange(d2)
    srow = (m[:, None] // d == np.arange(d)[None, :]).astype(np.float32)  # (d2, d)
    scol = (m[:, None] % d == np.arange(d)[None, :]).astype(np.float32)   # (d2, d)

    entries = [
        # fused first layer [W1; A1] and its stacked bias column [b1; c1]
        ("w1a1", np.concatenate([w1, a1], axis=0)),               # (h+64, d)
        ("bc1", np.concatenate([b1.reshape(h, 1),
                                c1.reshape(64, 1)], axis=0)),     # (h+64, 1)
        # Hamiltonian-gradient path
        ("w2", w2),                                               # (d, h)
        ("w2t", w2.T),                                            # (h, d)
        ("w1t", w1.T),                                            # (d, h)
        # JR_net tail (a3 left un-split -> fused J|R head)
        ("a2", a2), ("c2", c2.reshape(64, 1)),
        ("a3", a3), ("c3", c3.reshape(2 * d2, 1)),
        # selection matrices for the segmented-sum (J - R) gH
        ("src", np.concatenate([srow, scol], axis=0)),            # (2*d2, d)
        ("srowT", srow.T), ("scolT", scol.T),                     # (d, d2)
        ("scol", scol),                                           # (d2, d)
    ]

    LANES = 128
    layout, blocks, rows = {}, [], 0
    for name, arr in entries:
        r, c = arr.shape
        assert c <= LANES, f"{name} wider than one lane tile (needs d*d <= {LANES})"
        rpad = -(-r // 8) * 8                      # sublane-align each block
        blk = np.zeros((rpad, LANES), np.float32)
        blk[:r, :c] = arr
        layout[name] = (rows, r, c)
        rows += rpad
        blocks.append(blk)
    packed = jnp.asarray(np.concatenate(blocks, axis=0), dtype=dtype)  # (R, 128)
    return packed, layout


# ----------------------------------------------------------------------------
# Wrapper (LatentLyaProj.forward)
# ----------------------------------------------------------------------------
def latent_lya_proj(z, packed, layout, u=None, *, dt, mu=0.1, eps=0.01,
                    block_b=512):
    """Returns (z + dt * dz, None), matching LatentLyaProj.forward. `u` unused."""
    del u
    B, d = z.shape
    h = layout["w2"][2]
    LANE = 128

    def round_up(x, m):
        return -(-x // m) * m

    # Batch lives on the lane axis -> tiles are multiples of 128 lanes.
    Bp = round_up(B, LANE)
    bb = min(round_up(block_b, LANE), Bp)
    # Give the grid >= 2 tiles when the batch allows it, so v7x's second
    # TensorCore is used (free on v5e/v6e).
    if Bp >= 2 * LANE and Bp // bb < 2:
        bb = round_up(Bp // 2, LANE)
    Bp = round_up(B, bb)

    zt = jnp.asarray(z, jnp.float32).T                    # (d, B) feature-major
    if Bp != B:
        zt = jnp.pad(zt, ((0, 0), (0, Bp - B)))

    P = packed.shape[0]
    kernel = functools.partial(_latent_lya_kernel, layout=layout,
                               mu=mu, eps=eps, dt=dt, h=h, d=d)

    d2 = d * d
    mm_flops_per_col = 2 * ((h + 64) * d + 3 * d * h + 64 * 64
                            + 2 * d2 * 64 + 2 * d2 * d
                            + 3 * d * d2 + d2 * d + d * d2)
    cost = pl.CostEstimate(
        flops=int(mm_flops_per_col * Bp),
        transcendentals=int((h + 64 + 64) * Bp),
        bytes_accessed=int(4 * 2 * d * Bp
                           + int(packed.size) * packed.dtype.itemsize),
    )

    out = pl.pallas_call(
        kernel,
        out_shape=jax.ShapeDtypeStruct((d, Bp), jnp.float32),
        grid=(Bp // bb,),
        in_specs=[
            pl.BlockSpec((d, bb), lambda i: (0, i)),      # z: batch tiled on lanes
            pl.BlockSpec((P, 128), lambda i: (0, 0)),     # params: VMEM-resident
        ],
        out_specs=pl.BlockSpec((d, bb), lambda i: (0, i)),
        compiler_params=pltpu.CompilerParams(
            dimension_semantics=("parallel",)),
        cost_estimate=cost,
    )(zt, packed)
    return out[:, :B].T, None


# ----------------------------------------------------------------------------
# Params + pure-JAX reference
# ----------------------------------------------------------------------------
def init_params(key, latent_dim, bln_units):
    d, h = latent_dim, bln_units
    ks = jax.random.split(key, 9)

    def w(k, shape, scale):
        return scale * jax.random.normal(k, shape, dtype=jnp.float32)

    return {
        # surrogate Hamiltonian net
        "w1": w(ks[0], (h, d), 0.3),
        "b1": w(ks[1], (1, h), 0.1),
        "w2": w(ks[2], (d, h), 0.3),
        # JR_net
        "a1": w(ks[3], (64, d), 0.3),
        "c1": w(ks[4], (1, 64), 0.1),
        "a2": w(ks[5], (64, 64), 0.15),
        "c2": w(ks[6], (1, 64), 0.1),
        "a3": w(ks[7], (2 * d * d, 64), 0.1),
        "c3": w(ks[8], (1, 2 * d * d), 0.05),
    }


def reference(z, p, *, latent_dim, dt, mu=0.1, eps=0.01):
    """Pure-JAX reference mirroring the PyTorch forward (autodiff for gH)."""
    d = latent_dim

    def H(zs):  # zs: (d,)
        u = p["w1"] @ zs + p["b1"][0]
        g = mu * zs + p["w2"] @ jnp.tanh(u)
        return 0.5 * jnp.sum(g * g)

    gH = jax.vmap(jax.grad(H))(z)
    h1 = jnp.tanh(z @ p["a1"].T + p["c1"][0])
    h2 = jnp.tanh(h1 @ p["a2"].T + p["c2"][0])
    jr = h2 @ p["a3"].T + p["c3"][0]
    B = z.shape[0]
    Jf = jr[:, :d * d].reshape(B, d, d)
    Rf = jr[:, d * d:].reshape(B, d, d)
    J = Jf - jnp.transpose(Jf, (0, 2, 1))
    R = jnp.einsum("bik,bjk->bij", Rf, Rf)
    dz = jnp.einsum("bij,bj->bi", J - R, gH) - eps * gH
    return z + dt * dz


if __name__ == "__main__":
    latent_dim = 8
    bln_units = 32
    batch = 128
    mu, eps, dt = 0.1, 0.01, 0.05

    key = jax.random.PRNGKey(0)
    k_z, k_p = jax.random.split(key)
    z = jax.random.normal(k_z, (batch, latent_dim), dtype=jnp.float32)
    params = init_params(k_p, latent_dim, bln_units)

    z_next_ref = reference(z, params, latent_dim=latent_dim, dt=dt, mu=mu, eps=eps)

    # f32 MXU operands (default): tight correctness check.
    packed, layout = pack_params(params, latent_dim, dtype=jnp.float32)
    z_next, aux = latent_lya_proj(z, packed, layout, dt=dt, mu=mu, eps=eps)
    z_next = jax.block_until_ready(z_next)
    assert aux is None
    assert z_next.shape == (batch, latent_dim)
    assert jnp.allclose(z_next, z_next_ref, atol=1e-4, rtol=1e-4), (
        f"f32 max abs err {jnp.max(jnp.abs(z_next - z_next_ref))}")

    # bf16 MXU operands (recommended on v6e/v7x): f32 accumulation + elementwise,
    # looser tolerance as noted in the perf review.
    packed16, layout16 = pack_params(params, latent_dim, dtype=jnp.bfloat16)
    z16, _ = latent_lya_proj(z, packed16, layout16, dt=dt, mu=mu, eps=eps)
    z16 = jax.block_until_ready(z16)
    assert jnp.allclose(z16, z_next_ref, atol=3e-2, rtol=3e-2), (
        f"bf16 max abs err {jnp.max(jnp.abs(z16 - z_next_ref))}")

    print("KERNEL_OK")
</pallas_src>

<mosaic_0001>
module attributes {stable_mosaic.version = 11 : i64} {
  func.func @_latent_lya_kernel(%arg0: i32, %arg1: memref<8x128xf32, #tpu.memory_space<vmem>>, %arg2: memref<832x128xf32, #tpu.memory_space<vmem>>, %arg3: memref<8x128xf32, #tpu.memory_space<vmem>>) attributes {dimension_semantics = [#tpu.dimension_semantics<parallel>], iteration_bounds = array<i64: 1>, scalar_prefetch = 0 : i64, scratch_operands = 0 : i64, tpu.core_type = #tpu.core_type<tc>, window_params = [{transform_indices = @transform_0, window_bounds = array<i64: 8, 128>}, {pipeline_mode = #tpu.pipeline_mode<synchronous>, transform_indices = @transform_1, window_bounds = array<i64: 832, 128>}, {transform_indices = @transform_2, window_bounds = array<i64: 8, 128>}]} {
    %c0 = arith.constant 0 : index
    %c0_0 = arith.constant 0 : index
    %0 = vector.load %arg1[%c0, %c0_0] : memref<8x128xf32, #tpu.memory_space<vmem>>, vector<8x128xf32>
    %c0_1 = arith.constant 0 : index
    %c0_2 = arith.constant 0 : index
    %1 = vector.load %arg2[%c0_1, %c0_2] : memref<832x128xf32, #tpu.memory_space<vmem>>, vector<96x8xf32>
    %cst = arith.constant dense<0.000000e+00> : vector<96x128xf32>
    %2 = tpu.matmul %1, %0, %cst {dimension_numbers = #tpu.dot_dimension_numbers<[1], [0], [0], [1], [0, 0, 1, 1], [], []>} : vector<96x8xf32>, vector<8x128xf32>, vector<96x128xf32> -> vector<96x128xf32>
    %c96 = arith.constant 96 : index
    %c0_3 = arith.constant 0 : index
    %3 = vector.load %arg2[%c96, %c0_3] : memref<832x128xf32, #tpu.memory_space<vmem>>, vector<96x1xf32>
    %4 = vector.broadcast %3 : vector<96x1xf32> to vector<96x128xf32>
    %5 = arith.addf %2, %4 : vector<96x128xf32>
    %6 = math.tanh %5 : vector<96x128xf32>
    %7 = vector.extract_strided_slice %6 {offsets = [0, 0], sizes = [32, 128], strides = [1, 1]} : vector<96x128xf32> to vector<32x128xf32>
    %8 = vector.extract_strided_slice %6 {offsets = [32, 0], sizes = [64, 128], strides = [1, 1]} : vector<96x128xf32> to vector<64x128xf32>
    %cst_4 = arith.constant 1.000000e-01 : f32
    %9 = vector.broadcast %cst_4 : f32 to vector<8x128xf32>
    %10 = arith.mulf %9, %0 : vector<8x128xf32>
    %c192 = arith.constant 192 : index
    %c0_5 = arith.constant 0 : index
    %11 = vector.load %arg2[%c192, %c0_5] : memref<832x128xf32, #tpu.memory_space<vmem>>, vector<8x32xf32>
    %cst_6 = arith.constant dense<0.000000e+00> : vector<8x128xf32>
    %12 = tpu.matmul %11, %7, %cst_6 {dimension_numbers = #tpu.dot_dimension_numbers<[1], [0], [0], [1], [0, 0, 1, 1], [], []>} : vector<8x32xf32>, vector<32x128xf32>, vector<8x128xf32> -> vector<8x128xf32>
    %13 = arith.addf %10, %12 : vector<8x128xf32>
    %14 = arith.mulf %7, %7 : vector<32x128xf32>
    %cst_7 = arith.constant 1.000000e+00 : f32
    %15 = vector.broadcast %cst_7 : f32 to vector<32x128xf32>
    %16 = arith.subf %15, %14 : vector<32x128xf32>
    %c200 = arith.constant 200 : index
    %c0_8 = arith.constant 0 : index
    %17 = vector.load %arg2[%c200, %c0_8] : memref<832x128xf32, #tpu.memory_space<vmem>>, vector<32x8xf32>
    %cst_9 = arith.constant dense<0.000000e+00> : vector<32x128xf32>
    %18 = tpu.matmul %17, %13, %cst_9 {dimension_numbers = #tpu.dot_dimension_numbers<[1], [0], [0], [1], [0, 0, 1, 1], [], []>} : vector<32x8xf32>, vector<8x128xf32>, vector<32x128xf32> -> vector<32x128xf32>
    %cst_10 = arith.constant 1.000000e-01 : f32
    %19 = vector.broadcast %cst_10 : f32 to vector<8x128xf32>
    %20 = arith.mulf %19, %13 : vector<8x128xf32>
    %c232 = arith.constant 232 : index
    %c0_11 = arith.constant 0 : index
    %21 = vector.load %arg2[%c232, %c0_11] : memref<832x128xf32, #tpu.memory_space<vmem>>, vector<8x32xf32>
    %22 = arith.mulf %16, %18 : vector<32x128xf32>
    %cst_12 = arith.constant dense<0.000000e+00> : vector<8x128xf32>
    %23 = tpu.matmul %21, %22, %cst_12 {dimension_numbers = #tpu.dot_dimension_numbers<[1], [0], [0], [1], [0, 0, 1, 1], [], []>} : vector<8x32xf32>, vector<32x128xf32>, vector<8x128xf32> -> vector<8x128xf32>
    %24 = arith.addf %20, %23 : vector<8x128xf32>
    %c240 = arith.constant 240 : index
    %c0_13 = arith.constant 0 : index
    %25 = vector.load %arg2[%c240, %c0_13] : memref<832x128xf32, #tpu.memory_space<vmem>>, vector<64x64xf32>
    %cst_14 = arith.constant dense<0.000000e+00> : vector<64x128xf32>
    %26 = tpu.matmul %25, %8, %cst_14 {dimension_numbers = #tpu.dot_dimension_numbers<[1], [0], [0], [1], [0, 0, 1, 1], [], []>} : vector<64x64xf32>, vector<64x128xf32>, vector<64x128xf32> -> vector<64x128xf32>
    %c304 = arith.constant 304 : index
    %c0_15 = arith.constant 0 : index
    %27 = vector.load %arg2[%c304, %c0_15] : memref<832x128xf32, #tpu.memory_space<vmem>>, vector<64x1xf32>
    %28 = vector.broadcast %27 : vector<64x1xf32> to vector<64x128xf32>
    %29 = arith.addf %26, %28 : vector<64x128xf32>
    %30 = math.tanh %29 : vector<64x128xf32>
    %c368 = arith.constant 368 : index
    %c0_16 = arith.constant 0 : index
    %31 = vector.load %arg2[%c368, %c0_16] : memref<832x128xf32, #tpu.memory_space<vmem>>, vector<128x64xf32>
    %cst_17 = arith.constant dense<0.000000e+00> : vector<128x128xf32>
    %32 = tpu.matmul %31, %30, %cst_17 {dimension_numbers = #tpu.dot_dimension_numbers<[1], [0], [0], [1], [0, 0, 1, 1], [], []>} : vector<128x64xf32>, vector<64x128xf32>, vector<128x128xf32> -> vector<128x128xf32>
    %c496 = arith.constant 496 : index
    %c0_18 = arith.constant 0 : index
    %33 = vector.load %arg2[%c496, %c0_18] : memref<832x128xf32, #tpu.memory_space<vmem>>, vector<128x1xf32>
    %34 = vector.broadcast %33 : vector<128x1xf32> to vector<128x128xf32>
    %35 = arith.addf %32, %34 : vector<128x128xf32>
    %36 = vector.extract_strided_slice %35 {offsets = [0, 0], sizes = [64, 128], strides = [1, 1]} : vector<128x128xf32> to vector<64x128xf32>
    %37 = vector.extract_strided_slice %35 {offsets = [64, 0], sizes = [64, 128], strides = [1, 1]} : vector<128x128xf32> to vector<64x128xf32>
    %c624 = arith.constant 624 : index
    %c0_19 = arith.constant 0 : index
    %38 = vector.load %arg2[%c624, %c0_19] : memref<832x128xf32, #tpu.memory_space<vmem>>, vector<128x8xf32>
    %cst_20 = arith.constant dense<0.000000e+00> : vector<128x128xf32>
    %39 = tpu.matmul %38, %24, %cst_20 {dimension_numbers = #tpu.dot_dimension_numbers<[1], [0], [0], [1], [0, 0, 1, 1], [], []>} : vector<128x8xf32>, vector<8x128xf32>, vector<128x128xf32> -> vector<128x128xf32>
    %40 = vector.extract_strided_slice %39 {offsets = [0, 0], sizes = [64, 128], strides = [1, 1]} : vector<128x128xf32> to vector<64x128xf32>
    %41 = vector.extract_strided_slice %39 {offsets = [64, 0], sizes = [64, 128], strides = [1, 1]} : vector<128x128xf32> to vector<64x128xf32>
    %c752 = arith.constant 752 : index
    %c0_21 = arith.constant 0 : index
    %42 = vector.load %arg2[%c752, %c0_21] : memref<832x128xf32, #tpu.memory_space<vmem>>, vector<8x64xf32>
    %43 = arith.mulf %36, %41 : vector<64x128xf32>
    %cst_22 = arith.constant dense<0.000000e+00> : vector<8x128xf32>
    %44 = tpu.matmul %42, %43, %cst_22 {dimension_numbers = #tpu.dot_dimension_numbers<[1], [0], [0], [1], [0, 0, 1, 1], [], []>} : vector<8x64xf32>, vector<64x128xf32>, vector<8x128xf32> -> vector<8x128xf32>
    %c760 = arith.constant 760 : index
    %c0_23 = arith.constant 0 : index
    %45 = vector.load %arg2[%c760, %c0_23] : memref<832x128xf32, #tpu.memory_space<vmem>>, vector<8x64xf32>
    %46 = arith.mulf %36, %40 : vector<64x128xf32>
    %cst_24 = arith.constant dense<0.000000e+00> : vector<8x128xf32>
    %47 = tpu.matmul %45, %46, %cst_24 {dimension_numbers = #tpu.dot_dimension_numbers<[1], [0], [0], [1], [0, 0, 1, 1], [], []>} : vector<8x64xf32>, vector<64x128xf32>, vector<8x128xf32> -> vector<8x128xf32>
    %c760_25 = arith.constant 760 : index
    %c0_26 = arith.constant 0 : index
    %48 = vector.load %arg2[%c760_25, %c0_26] : memref<832x128xf32, #tpu.memory_space<vmem>>, vector<8x64xf32>
    %49 = arith.mulf %37, %40 : vector<64x128xf32>
    %cst_27 = arith.constant dense<0.000000e+00> : vector<8x128xf32>
    %50 = tpu.matmul %48, %49, %cst_27 {dimension_numbers = #tpu.dot_dimension_numbers<[1], [0], [0], [1], [0, 0, 1, 1], [], []>} : vector<8x64xf32>, vector<64x128xf32>, vector<8x128xf32> -> vector<8x128xf32>
    %c768 = arith.constant 768 : index
    %c0_28 = arith.constant 0 : index
    %51 = vector.load %arg2[%c768, %c0_28] : memref<832x128xf32, #tpu.memory_space<vmem>>, vector<64x8xf32>
    %cst_29 = arith.constant dense<0.000000e+00> : vector<64x128xf32>
    %52 = tpu.matmul %51, %50, %cst_29 {dimension_numbers = #tpu.dot_dimension_numbers<[1], [0], [0], [1], [0, 0, 1, 1], [], []>} : vector<64x8xf32>, vector<8x128xf32>, vector<64x128xf32> -> vector<64x128xf32>
    %c752_30 = arith.constant 752 : index
    %c0_31 = arith.constant 0 : index
    %53 = vector.load %arg2[%c752_30, %c0_31] : memref<832x128xf32, #tpu.memory_space<vmem>>, vector<8x64xf32>
    %54 = arith.mulf %37, %52 : vector<64x128xf32>
    %cst_32 = arith.constant dense<0.000000e+00> : vector<8x128xf32>
    %55 = tpu.matmul %53, %54, %cst_32 {dimension_numbers = #tpu.dot_dimension_numbers<[1], [0], [0], [1], [0, 0, 1, 1], [], []>} : vector<8x64xf32>, vector<64x128xf32>, vector<8x128xf32> -> vector<8x128xf32>
    %56 = arith.subf %44, %47 : vector<8x128xf32>
    %57 = arith.subf %56, %55 : vector<8x128xf32>
    %cst_33 = arith.constant 0.00999999977 : f32
    %58 = vector.broadcast %cst_33 : f32 to vector<8x128xf32>
    %59 = arith.mulf %58, %24 : vector<8x128xf32>
    %60 = arith.subf %57, %59 : vector<8x128xf32>
    %cst_34 = arith.constant 5.000000e-02 : f32
    %61 = vector.broadcast %cst_34 : f32 to vector<8x128xf32>
    %62 = arith.mulf %61, %60 : vector<8x128xf32>
    %63 = arith.addf %0, %62 : vector<8x128xf32>
    %c0_35 = arith.constant 0 : index
    %c0_36 = arith.constant 0 : index
    %64 = vector.load %arg3[%c0_35, %c0_36] : memref<8x128xf32, #tpu.memory_space<vmem>>, vector<8x128xf32>
    tpu.vector_store %arg3[%c0_35, %c0_36], %63 {strides = array<i32>} : memref<8x128xf32, #tpu.memory_space<vmem>>, vector<8x128xf32>,
    return
  }
  func.func @transform_0(%arg0: i32) -> (i32, i32) {
    %c0_i32 = arith.constant 0 : i32
    %c0_i32_0 = arith.constant 0 : i32
    return %c0_i32, %arg0 : i32, i32
  }
  func.func @transform_1(%arg0: i32) -> (i32, i32) {
    %c0_i32 = arith.constant 0 : i32
    %c0_i32_0 = arith.constant 0 : i32
    %c0_i32_1 = arith.constant 0 : i32
    return %c0_i32, %c0_i32_0 : i32, i32
  }
  func.func @transform_2(%arg0: i32) -> (i32, i32) {
    %c0_i32 = arith.constant 0 : i32
    %c0_i32_0 = arith.constant 0 : i32
    return %c0_i32, %arg0 : i32, i32
  }
}

</mosaic_0001>

<llo_original>
// kernel: tpu_custom_call.1
$region0: #{tpu_custom_call.1}
  #allocation0 [shape = 'u32[]', space=smem, size = 0x4, offset = 0x4, fixed_abs, tag = 'smem constant byte address 0x4 - core index']
  #allocation1 [shape = 'u32[72,128]{1,0:T(1,128)}', space=vmem, size = 0x9000, scoped, tag = 'internal scratch']
  %s0 = inlined_call_operand.hbm [shape: f32[8,128], index: 0, kind: input, shape index: {}]
  %s1 = inlined_call_operand.hbm [shape: f32[832,128], index: 1, kind: input, shape index: {}]
  %s2 = inlined_call_operand.hbm [shape: f32[8,128], index: 2, kind: output, shape index: {}]
  %s3 = sld [smem:[#allocation0]]
  $region26: #{tpu_custom_call.1} parent=0
    _
  %s5 = ssub.s32 1, %s3
  %s6 = scalar_select 0, %s5, %s3
  $region1: #{tpu_custom_call.1} parent=0
    #allocation2 [shape = 'u8[4096]{0}', space=vmem, size = 0x1000, scoped, tag = 'input window, operand 0, single buffered']
    #allocation3 [shape = 's32[1]{0}', space=sflag, size = 0x4, scoped, tag = 'scoped memory for tpu_custom_call.1']
    #allocation4 [shape = 's32[1]{0}', space=sflag, size = 0x4, scoped, tag = 'scoped memory for tpu_custom_call.1']
    #allocation5 [shape = 'u8[425984]{0}', space=vmem, size = 0x68000, scoped, tag = 'input window, operand 1, single buffered']
    #allocation6 [shape = 's32[1]{0}', space=sflag, size = 0x4, scoped, tag = 'scoped memory for tpu_custom_call.1']
    #allocation7 [shape = 'u8[4096]{0}', space=vmem, size = 0x1000, scoped, tag = 'output window, operand 0, single buffered']
    %7 = vsyncpa [#allocation3], 0
    %8 = vsyncpa [#allocation6], 0
    %9 = vsyncpa [#allocation4], 0
    // Predicated region
    $region2: #{tpu_custom_call.1} parent=1 // pred_check
      _
    $region3: #{tpu_custom_call.1} parent=1 // pred_check_branch
      %11 = sbr.rel (0) target = $region5
    $region4: #{tpu_custom_call.1} parent=1 // pred_region
      %13 = vsyncadd [#allocation3], 0
      %s15 = sshll.u32 %s0, 4
      %s16 = int_to_ptr.hbm [resolvable:$true] %s15
      %s17 = sshll.u32 [#allocation2], 4
      %s18 = int_to_ptr.vmem [resolvable:$true] %s17
      %20 = dma.hbm_to_vmem [thread:$0]  %s16, 128, %s18, [#allocation3]
    $region5: #{tpu_custom_call.1} parent=1 // pred_fallthru
      _
    // Predicated region
    $region6: #{tpu_custom_call.1} parent=1 // pred_check
      _
    $region7: #{tpu_custom_call.1} parent=1 // pred_check_branch
      %22 = sbr.rel (0) target = $region9
    $region8: #{tpu_custom_call.1} parent=1 // pred_region
      %24 = vsyncadd [#allocation6], 0
      %s25 = sshll.u32 %s1, 4
      %s26 = int_to_ptr.hbm [resolvable:$true] %s25
      %s27 = sshll.u32 [#allocation5], 4
      %s28 = int_to_ptr.vmem [resolvable:$true] %s27
      %33 = dma.hbm_to_vmem [thread:$0]  %s26, 13312, %s28, [#allocation6], 128, 128, 8
    $region9: #{tpu_custom_call.1} parent=1 // pred_fallthru
      _
    // Predicated region
    $region10: #{tpu_custom_call.1} parent=1 // pred_check
      _
    $region11: #{tpu_custom_call.1} parent=1 // pred_check_branch
      %35 = sbr.rel (0) target = $region13
    $region12: #{tpu_custom_call.1} parent=1 // pred_region
      %37 = dma.done [#allocation3], 128
    $region13: #{tpu_custom_call.1} parent=1 // pred_fallthru
      _
    // Predicated region
    $region14: #{tpu_custom_call.1} parent=1 // pred_check
      _
    $region15: #{tpu_custom_call.1} parent=1 // pred_check_branch
      %39 = sbr.rel (0) target = $region17
    $region16: #{tpu_custom_call.1} parent=1 // pred_region
      %41 = dma.done [#allocation6], 13312
    $region17: #{tpu_custom_call.1} parent=1 // pred_fallthru
      _
    %v42 = vld [vmem:[#allocation2] sm:$0xff]
    %v43 = vld [vmem:[#allocation5] sm:$0xff]
    %v44 = vld [vmem:[#allocation5 + $0x8] sm:$0xff]
    %v45 = vld [vmem:[#allocation5 + $0x10] sm:$0xff]
    %v46 = vld [vmem:[#allocation5 + $0x18] sm:$0xff]
    %v47 = vld [vmem:[#allocation5 + $0x20] sm:$0xff]
    %v48 = vld [vmem:[#allocation5 + $0x28] sm:$0xff]
    %v49 = vld [vmem:[#allocation5 + $0x30] sm:$0xff]
    %v50 = vld [vmem:[#allocation5 + $0x38] sm:$0xff]
    %v51 = vld [vmem:[#allocation5 + $0x40] sm:$0xff]
    %v52 = vld [vmem:[#allocation5 + $0x48] sm:$0xff]
    %v53 = vld [vmem:[#allocation5 + $0x50] sm:$0xff]
    %v54 = vld [vmem:[#allocation5 + $0x58] sm:$0xff]
    %v55 = vld [vmem:[#allocation5 + $0x60] sm:$0xff]
    %v56 = vld [vmem:[#allocation5 + $0x68] sm:$0xff]
    %v57 = vld [vmem:[#allocation5 + $0x70] sm:$0xff]
    %v58 = vld [vmem:[#allocation5 + $0x78] sm:$0xff]
    %v59 = vld [vmem:[#allocation5 + $0x80] sm:$0xff]
    %v60 = vld [vmem:[#allocation5 + $0x88] sm:$0xff]
    %v61 = vld [vmem:[#allocation5 + $0x90] sm:$0xff]
    %v62 = vld [vmem:[#allocation5 + $0x98] sm:$0xff]
    %v63 = vld [vmem:[#allocation5 + $0xa0] sm:$0xff]
    %v64 = vld [vmem:[#allocation5 + $0xa8] sm:$0xff]
    %v65 = vld [vmem:[#allocation5 + $0xb0] sm:$0xff]
    %v66 = vld [vmem:[#allocation5 + $0xb8] sm:$0xff]
    %68 = vset.pattern.permute.xlu0 0
    %69 = vperm.xlu0 %68, %v55
    %v70 = vpop.permute.xlu0 %69
    %73 = vset.pattern.permute.xlu0 0
    %74 = vperm.xlu0 %73, %v56
    %v75 = vpop.permute.xlu0 %74
    %78 = vset.pattern.permute.xlu0 0
    %79 = vperm.xlu0 %78, %v57
    %v80 = vpop.permute.xlu0 %79
    %83 = vset.pattern.permute.xlu0 0
    %84 = vperm.xlu0 %83, %v58
    %v85 = vpop.permute.xlu0 %84
    %88 = vset.pattern.permute.xlu0 0
    %89 = vperm.xlu0 %88, %v59
    %v90 = vpop.permute.xlu0 %89
    %93 = vset.pattern.permute.xlu0 0
    %94 = vperm.xlu0 %93, %v60
    %v95 = vpop.permute.xlu0 %94
    %98 = vset.pattern.permute.xlu0 0
    %99 = vperm.xlu0 %98, %v61
    %v100 = vpop.permute.xlu0 %99
    %103 = vset.pattern.permute.xlu0 0
    %104 = vperm.xlu0 %103, %v62
    %v105 = vpop.permute.xlu0 %104
    %108 = vset.pattern.permute.xlu0 0
    %109 = vperm.xlu0 %108, %v63
    %v110 = vpop.permute.xlu0 %109
    %113 = vset.pattern.permute.xlu0 0
    %114 = vperm.xlu0 %113, %v64
    %v115 = vpop.permute.xlu0 %114
    %118 = vset.pattern.permute.xlu0 0
    %119 = vperm.xlu0 %118, %v65
    %v120 = vpop.permute.xlu0 %119
    %123 = vset.pattern.permute.xlu0 0
    %124 = vperm.xlu0 %123, %v66
    %v125 = vpop.permute.xlu0 %124
    %vm127 = vcmask 64512
    %v129 = vsel %vm127, %v43, 0
    %v132 = vsel %vm127, %v44, 0
    %v135 = vsel %vm127, %v45, 0
    %v138 = vsel %vm127, %v46, 0
    %v141 = vsel %vm127, %v47, 0
    %v144 = vsel %vm127, %v48, 0
    %v147 = vsel %vm127, %v49, 0
    %v150 = vsel %vm127, %v50, 0
    %v153 = vsel %vm127, %v51, 0
    %v156 = vsel %vm127, %v52, 0
    %v159 = vsel %vm127, %v53, 0
    %v162 = vsel %vm127, %v54, 0
    %164 = vmatpush.msra.mxu0 0.0
    %165 = vmatpush.msra.mxu0 0.0
    %166 = vmatpush.msra.mxu0 0.0
    %167 = vmatpush.msra.mxu0 0.0
    %168 = vmatpush.msra.mxu0 0.0
    %169 = vmatpush.msra.mxu0 0.0
    %170 = vmatpush.msra.mxu0 0.0
    %171 = vmatpush.msra.mxu0 0.0
    %172 = vmatpush.msra.mxu0 0.0
    %173 = vmatpush.msra.mxu0 0.0
    %174 = vmatpush.msra.mxu0 0.0
    %175 = vmatpush.msra.mxu0 0.0
    %176 = vmatpush.msra.mxu0 0.0
    %177 = vmatpush.msra.mxu0 0.0
    %178 = vmatpush.msra.mxu0 0.0
    %179 = vmatpush.msra.mxu0 %v42
    %180 = vmatmul.f32.gmra.mxu0 %v129
    %v181 = vpop.f32.mrf.mxu0
    %v182 = vadd.f32 %v70, %v181
    %183 = vmatmul.f32.gmra.mxu0 %v132
    %v184 = vpop.f32.mrf.mxu0
    %v185 = vadd.f32 %v75, %v184
    %186 = vmatmul.f32.gmra.mxu0 %v135
    %v187 = vpop.f32.mrf.mxu0
    %v188 = vadd.f32 %v80, %v187
    %189 = vmatmul.f32.gmra.mxu0 %v138
    %v190 = vpop.f32.mrf.mxu0
    %v191 = vadd.f32 %v85, %v190
    %192 = vmatmul.f32.gmra.mxu0 %v141
    %v193 = vpop.f32.mrf.mxu0
    %v194 = vadd.f32 %v90, %v193
    %195 = vmatmul.f32.gmra.mxu0 %v144
    %v196 = vpop.f32.mrf.mxu0
    %v197 = vadd.f32 %v95, %v196
    %198 = vmatmul.f32.gmra.mxu0 %v147
    %v199 = vpop.f32.mrf.mxu0
    %v200 = vadd.f32 %v100, %v199
    %201 = vmatmul.f32.gmra.mxu0 %v150
    %v202 = vpop.f32.mrf.mxu0
    %v203 = vadd.f32 %v105, %v202
    %204 = vmatmul.f32.gmra.mxu0 %v153
    %v205 = vpop.f32.mrf.mxu0
    %v206 = vadd.f32 %v110, %v205
    %207 = vmatmul.f32.gmra.mxu0 %v156
    %v208 = vpop.f32.mrf.mxu0
    %v209 = vadd.f32 %v115, %v208
    %210 = vmatmul.f32.gmra.mxu0 %v159
    %v211 = vpop.f32.mrf.mxu0
    %v212 = vadd.f32 %v120, %v211
    %213 = vmatmul.f32.gmra.mxu0 %v162
    %v214 = vpop.f32.mrf.mxu0
    %v215 = vadd.f32 %v125, %v214
    %216 = vdwg.mxu0
    %v217 = vtanh.pop %v182
    %v218 = vtanh.pop %v185
    %v219 = vtanh.pop %v188
    %v220 = vtanh.pop %v191
    %v221 = vtanh.pop %v194
    %v222 = vtanh.pop %v197
    %v223 = vtanh.pop %v200
    %v224 = vtanh.pop %v203
    %v225 = vtanh.pop %v206
    %v226 = vtanh.pop %v209
    %v227 = vtanh.pop %v212
    %v228 = vtanh.pop %v215
    %v229 = vmul.f32 %v42, 0.1
    %v230 = vld [vmem:[#allocation5 + $0xc0] sm:$0xff]
    %vm231 = vcmask 261120
    %v233 = vsel %vm231, %v230, 0
    %235 = vmatpush.msra.mxu0 0.0
    %236 = vmatpush.msra.mxu0 0.0
    %237 = vmatpush.msra.mxu0 0.0
    %238 = vmatpush.msra.mxu0 0.0
    %239 = vmatpush.msra.mxu0 0.0
    %240 = vmatpush.msra.mxu0 0.0
    %241 = vmatpush.msra.mxu0 0.0
    %242 = vmatpush.msra.mxu0 0.0
    %243 = vmatpush.msra.mxu0 0.0
    %244 = vmatpush.msra.mxu0 0.0
    %245 = vmatpush.msra.mxu0 0.0
    %246 = vmatpush.msra.mxu0 0.0
    %247 = vmatpush.msra.mxu0 %v220
    %248 = vmatpush.msra.mxu0 %v219
    %249 = vmatpush.msra.mxu0 %v218
    %250 = vmatpush.msra.mxu0 %v217
    %251 = vmatmul.f32.gmra.mxu0 %v233
    %v252 = vpop.f32.mrf.mxu0
    %v253 = vadd.f32 0.0, %v252
    %254 = vdwg.mxu0
    %v255 = vadd.f32 %v229, %v253
    %v256 = vmul.f32 %v217, %v217
    %v257 = vmul.f32 %v218, %v218
    %v258 = vmul.f32 %v219, %v219
    %v259 = vmul.f32 %v220, %v220
    %v260 = vsub.f32 1.0, %v256
    %v261 = vsub.f32 1.0, %v257
    %v262 = vsub.f32 1.0, %v258
    %v263 = vsub.f32 1.0, %v259
    %v264 = vld [vmem:[#allocation5 + $0xc8] sm:$0xff]
    %v265 = vld [vmem:[#allocation5 + $0xd0] sm:$0xff]
    %v266 = vld [vmem:[#allocation5 + $0xd8] sm:$0xff]
    %v267 = vld [vmem:[#allocation5 + $0xe0] sm:$0xff]
    %v269 = vsel %vm127, %v264, 0
    %v272 = vsel %vm127, %v265, 0
    %v275 = vsel %vm127, %v266, 0
    %v278 = vsel %vm127, %v267, 0
    %280 = vmatpush.msra.mxu0 0.0
    %281 = vmatpush.msra.mxu0 0.0
    %282 = vmatpush.msra.mxu0 0.0
    %283 = vmatpush.msra.mxu0 0.0
    %284 = vmatpush.msra.mxu0 0.0
    %285 = vmatpush.msra.mxu0 0.0
    %286 = vmatpush.msra.mxu0 0.0
    %287 = vmatpush.msra.mxu0 0.0
    %288 = vmatpush.msra.mxu0 0.0
    %289 = vmatpush.msra.mxu0 0.0
    %290 = vmatpush.msra.mxu0 0.0
    %291 = vmatpush.msra.mxu0 0.0
    %292 = vmatpush.msra.mxu0 0.0
    %293 = vmatpush.msra.mxu0 0.0
    %294 = vmatpush.msra.mxu0 0.0
    %295 = vmatpush.msra.mxu0 %v255
    %296 = vmatmul.f32.gmra.mxu0 %v269
    %v297 = vpop.f32.mrf.mxu0
    %v298 = vadd.f32 0.0, %v297
    %299 = vmatmul.f32.gmra.mxu0 %v272
    %v300 = vpop.f32.mrf.mxu0
    %v301 = vadd.f32 0.0, %v300
    %302 = vmatmul.f32.gmra.mxu0 %v275
    %v303 = vpop.f32.mrf.mxu0
    %v304 = vadd.f32 0.0, %v303
    %305 = vmatmul.f32.gmra.mxu0 %v278
    %v306 = vpop.f32.mrf.mxu0
    %v307 = vadd.f32 0.0, %v306
    %308 = vdwg.mxu0
    %v309 = vmul.f32 %v255, 0.1
    %v310 = vld [vmem:[#allocation5 + $0xe8] sm:$0xff]
    %v311 = vmul.f32 %v260, %v298
    %v312 = vmul.f32 %v261, %v301
    %v313 = vmul.f32 %v262, %v304
    %v314 = vmul.f32 %v263, %v307
    %v316 = vsel %vm231, %v310, 0
    %318 = vmatpush.msra.mxu0 0.0
    %319 = vmatpush.msra.mxu0 0.0
    %320 = vmatpush.msra.mxu0 0.0
    %321 = vmatpush.msra.mxu0 0.0
    %322 = vmatpush.msra.mxu0 0.0
    %323 = vmatpush.msra.mxu0 0.0
    %324 = vmatpush.msra.mxu0 0.0
    %325 = vmatpush.msra.mxu0 0.0
    %326 = vmatpush.msra.mxu0 0.0
    %327 = vmatpush.msra.mxu0 0.0
    %328 = vmatpush.msra.mxu0 0.0
    %329 = vmatpush.msra.mxu0 0.0
    %330 = vmatpush.msra.mxu0 %v314
    %331 = vmatpush.msra.mxu0 %v313
    %332 = vmatpush.msra.mxu0 %v312
    %333 = vmatpush.msra.mxu0 %v311
    %334 = vmatmul.f32.gmra.mxu0 %v316
    %v335 = vpop.f32.mrf.mxu0
    %v336 = vadd.f32 0.0, %v335
    %337 = vdwg.mxu0
    %v338 = vadd.f32 %v309, %v336
    %v339 = vld [vmem:[#allocation5 + $0xf0] sm:$0xff]
    %v340 = vld [vmem:[#allocation5 + $0xf8] sm:$0xff]
    %v341 = vld [vmem:[#allocation5 + $0x100] sm:$0xff]
    %v342 = vld [vmem:[#allocation5 + $0x108] sm:$0xff]
    %v343 = vld [vmem:[#allocation5 + $0x110] sm:$0xff]
    %v344 = vld [vmem:[#allocation5 + $0x118] sm:$0xff]
    %v345 = vld [vmem:[#allocation5 + $0x120] sm:$0xff]
    %v346 = vld [vmem:[#allocation5 + $0x128] sm:$0xff]
    %v347 = vld [vmem:[#allocation5 + $0x130] sm:$0xff]
    %v348 = vld [vmem:[#allocation5 + $0x138] sm:$0xff]
    %v349 = vld [vmem:[#allocation5 + $0x140] sm:$0xff]
    %v350 = vld [vmem:[#allocation5 + $0x148] sm:$0xff]
    %v351 = vld [vmem:[#allocation5 + $0x150] sm:$0xff]
    %v352 = vld [vmem:[#allocation5 + $0x158] sm:$0xff]
    %v353 = vld [vmem:[#allocation5 + $0x160] sm:$0xff]
    %v354 = vld [vmem:[#allocation5 + $0x168] sm:$0xff]
    %356 = vset.pattern.permute.xlu0 0
    %357 = vperm.xlu0 %356, %v347
    %v358 = vpop.permute.xlu0 %357
    %361 = vset.pattern.permute.xlu0 0
    %362 = vperm.xlu0 %361, %v348
    %v363 = vpop.permute.xlu0 %362
    %366 = vset.pattern.permute.xlu0 0
    %367 = vperm.xlu0 %366, %v349
    %v368 = vpop.permute.xlu0 %367
    %371 = vset.pattern.permute.xlu0 0
    %372 = vperm.xlu0 %371, %v350
    %v373 = vpop.permute.xlu0 %372
    %376 = vset.pattern.permute.xlu0 0
    %377 = vperm.xlu0 %376, %v351
    %v378 = vpop.permute.xlu0 %377
    %381 = vset.pattern.permute.xlu0 0
    %382 = vperm.xlu0 %381, %v352
    %v383 = vpop.permute.xlu0 %382
    %386 = vset.pattern.permute.xlu0 0
    %387 = vperm.xlu0 %386, %v353
    %v388 = vpop.permute.xlu0 %387
    %391 = vset.pattern.permute.xlu0 0
    %392 = vperm.xlu0 %391, %v354
    %v393 = vpop.permute.xlu0 %392
    %vm395 = vcmask 523264
    %v397 = vsel %vm395, %v339, 0
    %v400 = vsel %vm395, %v340, 0
    %v403 = vsel %vm395, %v341, 0
    %v406 = vsel %vm395, %v342, 0
    %v409 = vsel %vm395, %v343, 0
    %v412 = vsel %vm395, %v344, 0
    %v415 = vsel %vm395, %v345, 0
    %v418 = vsel %vm395, %v346, 0
    %420 = vmatpush.msra.mxu0 0.0
    %421 = vmatpush.msra.mxu0 0.0
    %422 = vmatpush.msra.mxu0 0.0
    %423 = vmatpush.msra.mxu0 0.0
    %424 = vmatpush.msra.mxu0 0.0
    %425 = vmatpush.msra.mxu0 0.0
    %426 = vmatpush.msra.mxu0 0.0
    %427 = vmatpush.msra.mxu0 0.0
    %428 = vmatpush.msra.mxu0 %v228
    %429 = vmatpush.msra.mxu0 %v227
    %430 = vmatpush.msra.mxu0 %v226
    %431 = vmatpush.msra.mxu0 %v225
    %432 = vmatpush.msra.mxu0 %v224
    %433 = vmatpush.msra.mxu0 %v223
    %434 = vmatpush.msra.mxu0 %v222
    %435 = vmatpush.msra.mxu0 %v221
    %436 = vmatmul.f32.gmra.mxu0 %v397
    %v437 = vpop.f32.mrf.mxu0
    %v438 = vadd.f32 %v358, %v437
    %439 = vmatmul.f32.gmra.mxu0 %v400
    %v440 = vpop.f32.mrf.mxu0
    %v441 = vadd.f32 %v363, %v440
    %442 = vmatmul.f32.gmra.mxu0 %v403
    %v443 = vpop.f32.mrf.mxu0
    %v444 = vadd.f32 %v368, %v443
    %445 = vmatmul.f32.gmra.mxu0 %v406
    %v446 = vpop.f32.mrf.mxu0
    %v447 = vadd.f32 %v373, %v446
    %448 = vmatmul.f32.gmra.mxu0 %v409
    %v449 = vpop.f32.mrf.mxu0
    %v450 = vadd.f32 %v378, %v449
    %451 = vmatmul.f32.gmra.mxu0 %v412
    %v452 = vpop.f32.mrf.mxu0
    %v453 = vadd.f32 %v383, %v452
    %454 = vmatmul.f32.gmra.mxu0 %v415
    %v455 = vpop.f32.mrf.mxu0
    %v456 = vadd.f32 %v388, %v455
    %457 = vmatmul.f32.gmra.mxu0 %v418
    %v458 = vpop.f32.mrf.mxu0
    %v459 = vadd.f32 %v393, %v458
    %460 = vdwg.mxu0
    %v461 = vtanh.pop %v438
    %v462 = vtanh.pop %v441
    %v463 = vtanh.pop %v444
    %v464 = vtanh.pop %v447
    %v465 = vtanh.pop %v450
    %v466 = vtanh.pop %v453
    %v467 = vtanh.pop %v456
    %v468 = vtanh.pop %v459
    %v469 = vld [vmem:[#allocation5 + $0x170] sm:$0xff]
    %v470 = vld [vmem:[#allocation5 + $0x178] sm:$0xff]
    %v471 = vld [vmem:[#allocation5 + $0x180] sm:$0xff]
    %v472 = vld [vmem:[#allocation5 + $0x188] sm:$0xff]
    %v473 = vld [vmem:[#allocation5 + $0x190] sm:$0xff]
    %v474 = vld [vmem:[#allocation5 + $0x198] sm:$0xff]
    %v475 = vld [vmem:[#allocation5 + $0x1a0] sm:$0xff]
    %v476 = vld [vmem:[#allocation5 + $0x1a8] sm:$0xff]
    %v477 = vld [vmem:[#allocation5 + $0x1b0] sm:$0xff]
    %v478 = vld [vmem:[#allocation5 + $0x1b8] sm:$0xff]
    %v479 = vld [vmem:[#allocation5 + $0x1c0] sm:$0xff]
    %v480 = vld [vmem:[#allocation5 + $0x1c8] sm:$0xff]
    %v481 = vld [vmem:[#allocation5 + $0x1d0] sm:$0xff]
    %v482 = vld [vmem:[#allocation5 + $0x1d8] sm:$0xff]
    %v483 = vld [vmem:[#allocation5 + $0x1e0] sm:$0xff]
    %v484 = vld [vmem:[#allocation5 + $0x1e8] sm:$0xff]
    %v485 = vld [vmem:[#allocation5 + $0x1f0] sm:$0xff]
    %v486 = vld [vmem:[#allocation5 + $0x1f8] sm:$0xff]
    %v487 = vld [vmem:[#allocation5 + $0x200] sm:$0xff]
    %v488 = vld [vmem:[#allocation5 + $0x208] sm:$0xff]
    %v489 = vld [vmem:[#allocation5 + $0x210] sm:$0xff]
    %v490 = vld [vmem:[#allocation5 + $0x218] sm:$0xff]
    %v491 = vld [vmem:[#allocation5 + $0x220] sm:$0xff]
    %v492 = vld [vmem:[#allocation5 + $0x228] sm:$0xff]
    %v493 = vld [vmem:[#allocation5 + $0x230] sm:$0xff]
    %v494 = vld [vmem:[#allocation5 + $0x238] sm:$0xff]
    %v495 = vld [vmem:[#allocation5 + $0x240] sm:$0xff]
    %v496 = vld [vmem:[#allocation5 + $0x248] sm:$0xff]
    %v497 = vld [vmem:[#allocation5 + $0x250] sm:$0xff]
    %v498 = vld [vmem:[#allocation5 + $0x258] sm:$0xff]
    %v499 = vld [vmem:[#allocation5 + $0x260] sm:$0xff]
    %v500 = vld [vmem:[#allocation5 + $0x268] sm:$0xff]
    %502 = vset.pattern.permute.xlu0 0
    %503 = vperm.xlu0 %502, %v485
    %v504 = vpop.permute.xlu0 %503
    %507 = vset.pattern.permute.xlu0 0
    %508 = vperm.xlu0 %507, %v486
    %v509 = vpop.permute.xlu0 %508
    %512 = vset.pattern.permute.xlu0 0
    %513 = vperm.xlu0 %512, %v487
    %v514 = vpop.permute.xlu0 %513
    %517 = vset.pattern.permute.xlu0 0
    %518 = vperm.xlu0 %517, %v488
    %v519 = vpop.permute.xlu0 %518
    %522 = vset.pattern.permute.xlu0 0
    %523 = vperm.xlu0 %522, %v489
    %v524 = vpop.permute.xlu0 %523
    %527 = vset.pattern.permute.xlu0 0
    %528 = vperm.xlu0 %527, %v490
    %v529 = vpop.permute.xlu0 %528
    %532 = vset.pattern.permute.xlu0 0
    %533 = vperm.xlu0 %532, %v491
    %v534 = vpop.permute.xlu0 %533
    %537 = vset.pattern.permute.xlu0 0
    %538 = vperm.xlu0 %537, %v492
    %v539 = vpop.permute.xlu0 %538
    %542 = vset.pattern.permute.xlu0 0
    %543 = vperm.xlu0 %542, %v493
    %v544 = vpop.permute.xlu0 %543
    %547 = vset.pattern.permute.xlu0 0
    %548 = vperm.xlu0 %547, %v494
    %v549 = vpop.permute.xlu0 %548
    %552 = vset.pattern.permute.xlu0 0
    %553 = vperm.xlu0 %552, %v495
    %v554 = vpop.permute.xlu0 %553
    %557 = vset.pattern.permute.xlu0 0
    %558 = vperm.xlu0 %557, %v496
    %v559 = vpop.permute.xlu0 %558
    %562 = vset.pattern.permute.xlu0 0
    %563 = vperm.xlu0 %562, %v497
    %v564 = vpop.permute.xlu0 %563
    %567 = vset.pattern.permute.xlu0 0
    %568 = vperm.xlu0 %567, %v498
    %v569 = vpop.permute.xlu0 %568
    %572 = vset.pattern.permute.xlu0 0
    %573 = vperm.xlu0 %572, %v499
    %v574 = vpop.permute.xlu0 %573
    %577 = vset.pattern.permute.xlu0 0
    %578 = vperm.xlu0 %577, %v500
    %v579 = vpop.permute.xlu0 %578
    %v582 = vsel %vm395, %v469, 0
    %v585 = vsel %vm395, %v470, 0
    %v588 = vsel %vm395, %v471, 0
    %v591 = vsel %vm395, %v472, 0
    %v594 = vsel %vm395, %v473, 0
    %v597 = vsel %vm395, %v474, 0
    %v600 = vsel %vm395, %v475, 0
    %v603 = vsel %vm395, %v476, 0
    %v606 = vsel %vm395, %v477, 0
    %v609 = vsel %vm395, %v478, 0
    %v612 = vsel %vm395, %v479, 0
    %v615 = vsel %vm395, %v480, 0
    %v618 = vsel %vm395, %v481, 0
    %v621 = vsel %vm395, %v482, 0
    %v624 = vsel %vm395, %v483, 0
    %v627 = vsel %vm395, %v484, 0
    %629 = vmatpush.msra.mxu0 0.0
    %630 = vmatpush.msra.mxu0 0.0
    %631 = vmatpush.msra.mxu0 0.0
    %632 = vmatpush.msra.mxu0 0.0
    %633 = vmatpush.msra.mxu0 0.0
    %634 = vmatpush.msra.mxu0 0.0
    %635 = vmatpush.msra.mxu0 0.0
    %636 = vmatpush.msra.mxu0 0.0
    %637 = vmatpush.msra.mxu0 %v468
    %638 = vmatpush.msra.mxu0 %v467
    %639 = vmatpush.msra.mxu0 %v466
    %640 = vmatpush.msra.mxu0 %v465
    %641 = vmatpush.msra.mxu0 %v464
    %642 = vmatpush.msra.mxu0 %v463
    %643 = vmatpush.msra.mxu0 %v462
    %644 = vmatpush.msra.mxu0 %v461
    %645 = vmatmul.f32.gmra.mxu0 %v582
    %v646 = vpop.f32.mrf.mxu0
    %v647 = vadd.f32 %v504, %v646
    %648 = vmatmul.f32.gmra.mxu0 %v585
    %v649 = vpop.f32.mrf.mxu0
    %v650 = vadd.f32 %v509, %v649
    %651 = vmatmul.f32.gmra.mxu0 %v588
    %v652 = vpop.f32.mrf.mxu0
    %v653 = vadd.f32 %v514, %v652
    %654 = vmatmul.f32.gmra.mxu0 %v591
    %v655 = vpop.f32.mrf.mxu0
    %v656 = vadd.f32 %v519, %v655
    %657 = vmatmul.f32.gmra.mxu0 %v594
    %v658 = vpop.f32.mrf.mxu0
    %v659 = vadd.f32 %v524, %v658
    %660 = vmatmul.f32.gmra.mxu0 %v597
    %v661 = vpop.f32.mrf.mxu0
    %v662 = vadd.f32 %v529, %v661
    %663 = vmatmul.f32.gmra.mxu0 %v600
    %v664 = vpop.f32.mrf.mxu0
    %v665 = vadd.f32 %v534, %v664
    %666 = vmatmul.f32.gmra.mxu0 %v603
    %v667 = vpop.f32.mrf.mxu0
    %v668 = vadd.f32 %v539, %v667
    %669 = vmatmul.f32.gmra.mxu0 %v606
    %v670 = vpop.f32.mrf.mxu0
    %v671 = vadd.f32 %v544, %v670
    %672 = vmatmul.f32.gmra.mxu0 %v609
    %v673 = vpop.f32.mrf.mxu0
    %v674 = vadd.f32 %v549, %v673
    %675 = vmatmul.f32.gmra.mxu0 %v612
    %v676 = vpop.f32.mrf.mxu0
    %v677 = vadd.f32 %v554, %v676
    %678 = vmatmul.f32.gmra.mxu0 %v615
    %v679 = vpop.f32.mrf.mxu0
    %v680 = vadd.f32 %v559, %v679
    %681 = vmatmul.f32.gmra.mxu0 %v618
    %v682 = vpop.f32.mrf.mxu0
    %v683 = vadd.f32 %v564, %v682
    %684 = vmatmul.f32.gmra.mxu0 %v621
    %v685 = vpop.f32.mrf.mxu0
    %v686 = vadd.f32 %v569, %v685
    %687 = vmatmul.f32.gmra.mxu0 %v624
    %v688 = vpop.f32.mrf.mxu0
    %v689 = vadd.f32 %v574, %v688
    %690 = vmatmul.f32.gmra.mxu0 %v627
    %v691 = vpop.f32.mrf.mxu0
    %v692 = vadd.f32 %v579, %v691
    %693 = vdwg.mxu0
    %v694 = vld [vmem:[#allocation5 + $0x270] sm:$0xff]
    %v695 = vld [vmem:[#allocation5 + $0x278] sm:$0xff]
    %v696 = vld [vmem:[#allocation5 + $0x280] sm:$0xff]
    %v697 = vld [vmem:[#allocation5 + $0x288] sm:$0xff]
    %v698 = vld [vmem:[#allocation5 + $0x290] sm:$0xff]
    %v699 = vld [vmem:[#allocation5 + $0x298] sm:$0xff]
    %v700 = vld [vmem:[#allocation5 + $0x2a0] sm:$0xff]
    %v701 = vld [vmem:[#allocation5 + $0x2a8] sm:$0xff]
    %v702 = vld [vmem:[#allocation5 + $0x2b0] sm:$0xff]
    %v703 = vld [vmem:[#allocation5 + $0x2b8] sm:$0xff]
    %v704 = vld [vmem:[#allocation5 + $0x2c0] sm:$0xff]
    %v705 = vld [vmem:[#allocation5 + $0x2c8] sm:$0xff]
    %v706 = vld [vmem:[#allocation5 + $0x2d0] sm:$0xff]
    %v707 = vld [vmem:[#allocation5 + $0x2d8] sm:$0xff]
    %v708 = vld [vmem:[#allocation5 + $0x2e0] sm:$0xff]
    %v709 = vld [vmem:[#allocation5 + $0x2e8] sm:$0xff]
    %v711 = vsel %vm127, %v694, 0
    %v714 = vsel %vm127, %v695, 0
    %v717 = vsel %vm127, %v696, 0
    %v720 = vsel %vm127, %v697, 0
    %v723 = vsel %vm127, %v698, 0
    %v726 = vsel %vm127, %v699, 0
    %v729 = vsel %vm127, %v700, 0
    %v732 = vsel %vm127, %v701, 0
    %v735 = vsel %vm127, %v702, 0
    %v738 = vsel %vm127, %v703, 0
    %v741 = vsel %vm127, %v704, 0
    %v744 = vsel %vm127, %v705, 0
    %v747 = vsel %vm127, %v706, 0
    %v750 = vsel %vm127, %v707, 0
    %v753 = vsel %vm127, %v708, 0
    %v756 = vsel %vm127, %v709, 0
    %758 = vmatpush.msra.mxu0 0.0
    %759 = vmatpush.msra.mxu0 0.0
    %760 = vmatpush.msra.mxu0 0.0
    %761 = vmatpush.msra.mxu0 0.0
    %762 = vmatpush.msra.mxu0 0.0
    %763 = vmatpush.msra.mxu0 0.0
    %764 = vmatpush.msra.mxu0 0.0
    %765 = vmatpush.msra.mxu0 0.0
    %766 = vmatpush.msra.mxu0 0.0
    %767 = vmatpush.msra.mxu0 0.0
    %768 = vmatpush.msra.mxu0 0.0
    %769 = vmatpush.msra.mxu0 0.0
    %770 = vmatpush.msra.mxu0 0.0
    %771 = vmatpush.msra.mxu0 0.0
    %772 = vmatpush.msra.mxu0 0.0
    %773 = vmatpush.msra.mxu0 %v338
    %774 = vmatmul.f32.gmra.mxu0 %v711
    %v775 = vpop.f32.mrf.mxu0
    %v776 = vadd.f32 0.0, %v775
    %777 = vmatmul.f32.gmra.mxu0 %v714
    %v778 = vpop.f32.mrf.mxu0
    %v779 = vadd.f32 0.0, %v778
    %780 = vmatmul.f32.gmra.mxu0 %v717
    %v781 = vpop.f32.mrf.mxu0
    %v782 = vadd.f32 0.0, %v781
    %783 = vmatmul.f32.gmra.mxu0 %v720
    %v784 = vpop.f32.mrf.mxu0
    %v785 = vadd.f32 0.0, %v784
    %786 = vmatmul.f32.gmra.mxu0 %v723
    %v787 = vpop.f32.mrf.mxu0
    %v788 = vadd.f32 0.0, %v787
    %789 = vmatmul.f32.gmra.mxu0 %v726
    %v790 = vpop.f32.mrf.mxu0
    %v791 = vadd.f32 0.0, %v790
    %792 = vmatmul.f32.gmra.mxu0 %v729
    %v793 = vpop.f32.mrf.mxu0
    %v794 = vadd.f32 0.0, %v793
    %795 = vmatmul.f32.gmra.mxu0 %v732
    %v796 = vpop.f32.mrf.mxu0
    %v797 = vadd.f32 0.0, %v796
    %798 = vmatmul.f32.gmra.mxu0 %v735
    %v799 = vpop.f32.mrf.mxu0
    %v800 = vadd.f32 0.0, %v799
    %801 = vmatmul.f32.gmra.mxu0 %v738
    %v802 = vpop.f32.mrf.mxu0
    %v803 = vadd.f32 0.0, %v802
    %804 = vmatmul.f32.gmra.mxu0 %v741
    %v805 = vpop.f32.mrf.mxu0
    %v806 = vadd.f32 0.0, %v805
    %807 = vmatmul.f32.gmra.mxu0 %v744
    %v808 = vpop.f32.mrf.mxu0
    %v809 = vadd.f32 0.0, %v808
    %810 = vmatmul.f32.gmra.mxu0 %v747
    %v811 = vpop.f32.mrf.mxu0
    %v812 = vadd.f32 0.0, %v811
    %813 = vmatmul.f32.gmra.mxu0 %v750
    %v814 = vpop.f32.mrf.mxu0
    %v815 = vadd.f32 0.0, %v814
    %816 = vmatmul.f32.gmra.mxu0 %v753
    %v817 = vpop.f32.mrf.mxu0
    %v818 = vadd.f32 0.0, %v817
    %819 = vmatmul.f32.gmra.mxu0 %v756
    %v820 = vpop.f32.mrf.mxu0
    %v821 = vadd.f32 0.0, %v820
    %822 = vdwg.mxu0
    %v823 = vld [vmem:[#allocation5 + $0x2f0] sm:$0xff]
    %v824 = vmul.f32 %v647, %v800
    %v825 = vmul.f32 %v650, %v803
    %v826 = vmul.f32 %v653, %v806
    %v827 = vmul.f32 %v656, %v809
    %v828 = vmul.f32 %v659, %v812
    %v829 = vmul.f32 %v662, %v815
    %v830 = vmul.f32 %v665, %v818
    %v831 = vmul.f32 %v668, %v821
    %v833 = vsel %vm395, %v823, 0
    %835 = vmatpush.msra.mxu0 0.0
    %836 = vmatpush.msra.mxu0 0.0
    %837 = vmatpush.msra.mxu0 0.0
    %838 = vmatpush.msra.mxu0 0.0
    %839 = vmatpush.msra.mxu0 0.0
    %840 = vmatpush.msra.mxu0 0.0
    %841 = vmatpush.msra.mxu0 0.0
    %842 = vmatpush.msra.mxu0 0.0
    %843 = vmatpush.msra.mxu0 %v831
    %844 = vmatpush.msra.mxu0 %v830
    %845 = vmatpush.msra.mxu0 %v829
    %846 = vmatpush.msra.mxu0 %v828
    %847 = vmatpush.msra.mxu0 %v827
    %848 = vmatpush.msra.mxu0 %v826
    %849 = vmatpush.msra.mxu0 %v825
    %850 = vmatpush.msra.mxu0 %v824
    %851 = vmatmul.f32.gmra.mxu0 %v833
    %v852 = vpop.f32.mrf.mxu0
    %v853 = vadd.f32 0.0, %v852
    %854 = vdwg.mxu0
    %v855 = vld [vmem:[#allocation5 + $0x2f8] sm:$0xff]
    %v856 = vmul.f32 %v647, %v776
    %v857 = vmul.f32 %v650, %v779
    %v858 = vmul.f32 %v653, %v782
    %v859 = vmul.f32 %v656, %v785
    %v860 = vmul.f32 %v659, %v788
    %v861 = vmul.f32 %v662, %v791
    %v862 = vmul.f32 %v665, %v794
    %v863 = vmul.f32 %v668, %v797
    %v865 = vsel %vm395, %v855, 0
    %867 = vmatpush.msra.mxu0 0.0
    %868 = vmatpush.msra.mxu0 0.0
    %869 = vmatpush.msra.mxu0 0.0
    %870 = vmatpush.msra.mxu0 0.0
    %871 = vmatpush.msra.mxu0 0.0
    %872 = vmatpush.msra.mxu0 0.0
    %873 = vmatpush.msra.mxu0 0.0
    %874 = vmatpush.msra.mxu0 0.0
    %875 = vmatpush.msra.mxu0 %v863
    %876 = vmatpush.msra.mxu0 %v862
    %877 = vmatpush.msra.mxu0 %v861
    %878 = vmatpush.msra.mxu0 %v860
    %879 = vmatpush.msra.mxu0 %v859
    %880 = vmatpush.msra.mxu0 %v858
    %881 = vmatpush.msra.mxu0 %v857
    %882 = vmatpush.msra.mxu0 %v856
    %883 = vmatmul.f32.gmra.mxu0 %v865
    %v884 = vpop.f32.mrf.mxu0
    %v885 = vadd.f32 0.0, %v884
    %886 = vdwg.mxu0
    %v887 = vmul.f32 %v671, %v776
    %v888 = vmul.f32 %v674, %v779
    %v889 = vmul.f32 %v677, %v782
    %v890 = vmul.f32 %v680, %v785
    %v891 = vmul.f32 %v683, %v788
    %v892 = vmul.f32 %v686, %v791
    %v893 = vmul.f32 %v689, %v794
    %v894 = vmul.f32 %v692, %v797
    %895 = vmatpush.msra.mxu0 0.0
    %896 = vmatpush.msra.mxu0 0.0
    %897 = vmatpush.msra.mxu0 0.0
    %898 = vmatpush.msra.mxu0 0.0
    %899 = vmatpush.msra.mxu0 0.0
    %900 = vmatpush.msra.mxu0 0.0
    %901 = vmatpush.msra.mxu0 0.0
    %902 = vmatpush.msra.mxu0 0.0
    %903 = vmatpush.msra.mxu0 %v894
    %904 = vmatpush.msra.mxu0 %v893
    %905 = vmatpush.msra.mxu0 %v892
    %906 = vmatpush.msra.mxu0 %v891
    %907 = vmatpush.msra.mxu0 %v890
    %908 = vmatpush.msra.mxu0 %v889
    %909 = vmatpush.msra.mxu0 %v888
    %910 = vmatpush.msra.mxu0 %v887
    %911 = vmatmul.f32.gmra.mxu0 %v865
    %v912 = vpop.f32.mrf.mxu0
    %v913 = vadd.f32 0.0, %v912
    %914 = vdwg.mxu0
    %v915 = vld [vmem:[#allocation5 + $0x300] sm:$0xff]
    %v916 = vld [vmem:[#allocation5 + $0x308] sm:$0xff]
    %v917 = vld [vmem:[#allocation5 + $0x310] sm:$0xff]
    %v918 = vld [vmem:[#allocation5 + $0x318] sm:$0xff]
    %v919 = vld [vmem:[#allocation5 + $0x320] sm:$0xff]
    %v920 = vld [vmem:[#allocation5 + $0x328] sm:$0xff]
    %v921 = vld [vmem:[#allocation5 + $0x330] sm:$0xff]
    %v922 = vld [vmem:[#allocation5 + $0x338] sm:$0xff]
    %v924 = vsel %vm127, %v915, 0
    %v927 = vsel %vm127, %v916, 0
    %v930 = vsel %vm127, %v917, 0
    %v933 = vsel %vm127, %v918, 0
    %v936 = vsel %vm127, %v919, 0
    %v939 = vsel %vm127, %v920, 0
    %v942 = vsel %vm127, %v921, 0
    %v945 = vsel %vm127, %v922, 0
    %947 = vmatpush.msra.mxu0 0.0
    %948 = vmatpush.msra.mxu0 0.0
    %949 = vmatpush.msra.mxu0 0.0
    %950 = vmatpush.msra.mxu0 0.0
    %951 = vmatpush.msra.mxu0 0.0
    %952 = vmatpush.msra.mxu0 0.0
    %953 = vmatpush.msra.mxu0 0.0
    %954 = vmatpush.msra.mxu0 0.0
    %955 = vmatpush.msra.mxu0 0.0
    %956 = vmatpush.msra.mxu0 0.0
    %957 = vmatpush.msra.mxu0 0.0
    %958 = vmatpush.msra.mxu0 0.0
    %959 = vmatpush.msra.mxu0 0.0
    %960 = vmatpush.msra.mxu0 0.0
    %961 = vmatpush.msra.mxu0 0.0
    %962 = vmatpush.msra.mxu0 %v913
    %963 = vmatmul.f32.gmra.mxu0 %v924
    %v964 = vpop.f32.mrf.mxu0
    %v965 = vadd.f32 0.0, %v964
    %966 = vmatmul.f32.gmra.mxu0 %v927
    %v967 = vpop.f32.mrf.mxu0
    %v968 = vadd.f32 0.0, %v967
    %969 = vmatmul.f32.gmra.mxu0 %v930
    %v970 = vpop.f32.mrf.mxu0
    %v971 = vadd.f32 0.0, %v970
    %972 = vmatmul.f32.gmra.mxu0 %v933
    %v973 = vpop.f32.mrf.mxu0
    %v974 = vadd.f32 0.0, %v973
    %975 = vmatmul.f32.gmra.mxu0 %v936
    %v976 = vpop.f32.mrf.mxu0
    %v977 = vadd.f32 0.0, %v976
    %978 = vmatmul.f32.gmra.mxu0 %v939
    %v979 = vpop.f32.mrf.mxu0
    %v980 = vadd.f32 0.0, %v979
    %981 = vmatmul.f32.gmra.mxu0 %v942
    %v982 = vpop.f32.mrf.mxu0
    %v983 = vadd.f32 0.0, %v982
    %984 = vmatmul.f32.gmra.mxu0 %v945
    %v985 = vpop.f32.mrf.mxu0
    %v986 = vadd.f32 0.0, %v985
    %987 = vdwg.mxu0
    %v988 = vmul.f32 %v671, %v965
    %v989 = vmul.f32 %v674, %v968
    %v990 = vmul.f32 %v677, %v971
    %v991 = vmul.f32 %v680, %v974
    %v992 = vmul.f32 %v683, %v977
    %v993 = vmul.f32 %v686, %v980
    %v994 = vmul.f32 %v689, %v983
    %v995 = vmul.f32 %v692, %v986
    %996 = vmatpush.msra.mxu0 0.0
    %997 = vmatpush.msra.mxu0 0.0
    %998 = vmatpush.msra.mxu0 0.0
    %999 = vmatpush.msra.mxu0 0.0
    %1000 = vmatpush.msra.mxu0 0.0
    %1001 = vmatpush.msra.mxu0 0.0
    %1002 = vmatpush.msra.mxu0 0.0
    %1003 = vmatpush.msra.mxu0 0.0
    %1004 = vmatpush.msra.mxu0 %v995
    %1005 = vmatpush.msra.mxu0 %v994
    %1006 = vmatpush.msra.mxu0 %v993
    %1007 = vmatpush.msra.mxu0 %v992
    %1008 = vmatpush.msra.mxu0 %v991
    %1009 = vmatpush.msra.mxu0 %v990
    %1010 = vmatpush.msra.mxu0 %v989
    %1011 = vmatpush.msra.mxu0 %v988
    %1012 = vmatmul.f32.gmra.mxu0 %v833
    %v1013 = vpop.f32.mrf.mxu0
    %v1014 = vadd.f32 0.0, %v1013
    %1015 = vdwg.mxu0
    %v1016 = vsub.f32 %v853, %v885
    %v1017 = vsub.f32 %v1016, %v1014
    %v1018 = vmul.f32 %v338, 0.01
    %v1019 = vsub.f32 %v1017, %v1018
    %v1020 = vmul.f32 %v1019, 0.05
    %v1021 = vadd.f32 %v42, %v1020
    %1022 = vst [vmem:[#allocation7] sm:$0xff] %v1021
    // Predicated region
    $region18: #{tpu_custom_call.1} parent=1 // pred_check
      _
    $region19: #{tpu_custom_call.1} parent=1 // pred_check_branch
      %1024 = sbr.rel (0) target = $region21
    $region20: #{tpu_custom_call.1} parent=1 // pred_region
      %1026 = vsyncadd [#allocation4], 0
      %s1028 = sshll.u32 [#allocation7], 4
      %s1029 = int_to_ptr.vmem [resolvable:$true] %s1028
      %s1030 = sshll.u32 %s2, 4
      %s1031 = int_to_ptr.hbm [resolvable:$true] %s1030
      %1033 = dma.vmem_to_hbm [thread:$0]  %s1029, 128, %s1031, [#allocation4]
    $region21: #{tpu_custom_call.1} parent=1 // pred_fallthru
      _
    // Predicated region
    $region22: #{tpu_custom_call.1} parent=1 // pred_check
      _
    $region23: #{tpu_custom_call.1} parent=1 // pred_check_branch
      %1035 = sbr.rel (0) target = $region25
    $region24: #{tpu_custom_call.1} parent=1 // pred_region
      %1037 = dma.done [#allocation4], 128
    $region25: #{tpu_custom_call.1} parent=1 // pred_fallthru
      _
    %1038 = vsyncpa [#allocation3], 1
    %1039 = vsyncpa [#allocation6], 1
    %1040 = vsyncpa [#allocation4], 1

</llo_original>
